<compile_context>
chip_gen: v7x
topology: tpu7x:2x2x1
jax: 0.10.0
libtpu: 0.0.40
codegen_flags: <defaults>
</compile_context>

<pallas_src>
import jax
import jax.numpy as jnp
from jax import lax
from jax.experimental import pallas as pl
from jax.experimental.pallas import tpu as pltpu


def _rn_b_kernel(x_ref, m_ref, st_ref, p_ref, o_ref):
    # x_ref: (1, Tc, HW) x.dtype   m_ref: (1, 1, HW) f32   st_ref: (1, 1, 128) f32
    # p_ref: (Tc, 8) f32           o_ref: (1, Tc, HW) x.dtype
    x = x_ref[0].astype(jnp.float32)       # (Tc, HW)
    m = m_ref[0]                           # (1, HW) binary {0, 1}
    hw = float(x.shape[-1])

    mb = m > 0.5                           # (1, HW) bool

    # --- one-pass moments (lane reductions) --------------------------------
    x2 = x * x
    xm = x * m
    x2m = x2 * m
    s1 = jnp.sum(x, axis=-1, keepdims=True)       # (Tc, 1)  Σx
    s2 = jnp.sum(x2, axis=-1, keepdims=True)      # (Tc, 1)  Σx²
    s1m = jnp.sum(xm, axis=-1, keepdims=True)     # (Tc, 1)  Σx·m
    s2m = jnp.sum(x2m, axis=-1, keepdims=True)    # (Tc, 1)  Σx²·m

    # --- per-region statistics (region sizes precomputed per batch) ---------
    st = st_ref[0]                        # (1, 128)
    rcp_f = st[:, 0:1]                    # (1, 1)  1 / Sr_fg  (Sr==0 -> 1)
    rcp_b = st[:, 1:2]                    # (1, 1)  1 / Sr_bg

    s1b = s1 - s1m
    s2b = s2 - s2m
    mu_f = s1m * rcp_f                    # (Tc, 1)
    mu_b = s1b * rcp_b
    # Σ over the FULL spatial extent of (region - mu)^2, as in the reference:
    var_f = (s2m - 2.0 * mu_f * s1m + hw * mu_f * mu_f) * rcp_f + 1e-5
    var_b = (s2b - 2.0 * mu_b * s1b + hw * mu_b * mu_b) * rcp_b + 1e-5
    inv_f = lax.rsqrt(var_f)              # EUP, frees VALU slots
    inv_b = lax.rsqrt(var_b)

    # --- fused normalization + affine ---------------------------------------
    p = p_ref[...]                        # (Tc, 8): cols [1+gf, 1+gb, bf+bb, 0...]
    a_f = p[:, 0:1]
    a_b = p[:, 1:2]
    bsum = p[:, 2:3]

    scale_f = inv_f * a_f
    scale_b = inv_b * a_b
    shift_f = bsum - mu_f * scale_f
    shift_b = bsum - mu_b * scale_b

    scale = jnp.where(mb, scale_f, scale_b)       # (Tc, HW)
    shift = jnp.where(mb, shift_f, shift_b)
    o_ref[0] = (x * scale + shift).astype(o_ref.dtype)


def _round_up(v, m):
    return (v + m - 1) // m * m


def _tpu_vmem_bytes():
    try:
        info = pltpu.get_tpu_info()
        v = getattr(info, "vmem_capacity_bytes", None)
        if v:
            return int(v)
    except Exception:
        pass
    return 64 * 1024 * 1024  # conservative (v7x per-TC physical VMEM)


def _choose_channel_tile(C, HW, itemsize, B, vmem_phys):
    """Pick (Tc, C_tot). C_tot == C unless padding is unavoidable."""
    # Per-tile cap ~VMEM/9: double-buffered x+out is 4 tiles, leaving >50%
    # headroom for mask/params and compiler-internal elementwise temporaries.
    cap_bytes = max(512 * 1024, vmem_phys // 9)
    cap_rows = max(1, cap_bytes // (HW * itemsize))

    cands = [d for d in range(8, C + 1, 8) if C % d == 0]
    c_tot = C
    if not cands:
        if C <= cap_rows or C <= 8:
            cands = [C]                    # full-channel block (block dim == array dim)
        else:
            # Rare fallback: no multiple-of-8 divisor and C too big for one tile.
            c_tot = _round_up(C, 8)
            cands = [d for d in range(8, c_tot + 1, 8) if c_tot % d == 0]

    fitting = [d for d in cands if d <= cap_rows] or [min(cands)]
    tc = max(fitting)
    # Prefer >= 4 grid steps (megacore sharding + double-buffered pipeline).
    while B * (c_tot // tc) < 4:
        smaller = [d for d in fitting if d < tc]
        if not smaller:
            break
        tc = max(smaller)
    return tc, c_tot


def nearest_interpolate(mask, out_hw):
    """F.interpolate(mask, size=out_hw, mode='nearest') — pure indexing glue."""
    B, C, H, W = mask.shape
    M, N = out_hw
    idx_h = (jnp.arange(M) * H) // M
    idx_w = (jnp.arange(N) * W) // N
    return mask[:, :, idx_h[:, None], idx_w[None, :]]


def rn_b_forward(x, mask, fg_gamma, fg_beta, bg_gamma, bg_beta):
    """x: (B, C, M, N), mask: (B, 1, H, W) binary. Returns (B, C, M, N) in x.dtype."""
    B, C, M, N = x.shape
    HW = M * N
    out_dtype = x.dtype
    itemsize = jnp.dtype(out_dtype).itemsize

    # Mask resize (indexing glue) + per-batch region sizes hoisted out of the kernel.
    mask_flat = nearest_interpolate(mask, (M, N)).astype(jnp.float32).reshape(B, 1, HW)
    sm = jnp.sum(mask_flat, axis=-1)                       # (B, 1)  Σm
    sr_f = jnp.where(sm == 0.0, 1.0, sm)                   # Sr[Sr==0] = 1
    sn_b = float(HW) - sm
    sr_b = jnp.where(sn_b == 0.0, 1.0, sn_b)
    stats = jnp.zeros((B, 1, 128), jnp.float32)
    stats = stats.at[:, 0, 0].set((1.0 / sr_f)[:, 0])
    stats = stats.at[:, 0, 1].set((1.0 / sr_b)[:, 0])

    vmem_phys = _tpu_vmem_bytes()
    Tc, C_tot = _choose_channel_tile(C, HW, itemsize, B, vmem_phys)

    x_flat = x.reshape(B, C, HW)                           # kept in input dtype
    if C_tot != C:                                         # rare fallback only
        x_flat = jnp.pad(x_flat, ((0, 0), (0, C_tot - C), (0, 0)))

    # Pack + pre-fold affine params into one array: [1+gf | 1+gb | bf+bb | 0s].
    params = jnp.zeros((C_tot, 8), dtype=jnp.float32)
    params = params.at[:C, 0].set(1.0 + fg_gamma.astype(jnp.float32))
    params = params.at[:C, 1].set(1.0 + bg_gamma.astype(jnp.float32))
    params = params.at[:C, 2].set((fg_beta + bg_beta).astype(jnp.float32))

    vmem_limit = max(16 * 1024 * 1024, int(0.75 * vmem_phys))

    out_flat = pl.pallas_call(
        _rn_b_kernel,
        out_shape=jax.ShapeDtypeStruct((B, C_tot, HW), out_dtype),
        grid_spec=pltpu.PrefetchScalarGridSpec(
            num_scalar_prefetch=0,
            grid=(B, C_tot // Tc),
            in_specs=[
                pl.BlockSpec((1, Tc, HW), lambda b, c: (b, c, 0)),
                pl.BlockSpec((1, 1, HW), lambda b, c: (b, 0, 0)),   # reused along c
                pl.BlockSpec((1, 1, 128), lambda b, c: (b, 0, 0)),  # per-batch 1/Sr
                pl.BlockSpec((Tc, 8), lambda b, c: (c, 0)),
            ],
            out_specs=pl.BlockSpec((1, Tc, HW), lambda b, c: (b, c, 0)),
        ),
        compiler_params=pltpu.CompilerParams(
            dimension_semantics=("parallel", "parallel"),
            vmem_limit_bytes=vmem_limit),
    )(x_flat, mask_flat, stats, params)

    if C_tot != C:
        out_flat = out_flat[:, :C, :]
    return out_flat.reshape(B, C, M, N)


def rn_b_reference(x, mask, fg_gamma, fg_beta, bg_gamma, bg_beta):
    """Pure-JAX reference mirroring the PyTorch module exactly."""
    B, C, M, N = x.shape
    mask = nearest_interpolate(mask, (M, N))

    def rn(region, m):
        s = jnp.sum(region, axis=(2, 3))                         # (B, C)
        sr = jnp.sum(m, axis=(2, 3))                             # (B, 1)
        sr = jnp.where(sr == 0.0, 1.0, sr)
        mu = s / sr                                              # (B, C)
        diff = region - mu[:, :, None, None]
        std = jnp.sqrt(jnp.sum(diff ** 2, axis=(2, 3)) / sr + 1e-5)
        return diff / std[:, :, None, None] * m

    rn_x = rn(x * mask, mask) + rn(x * (1.0 - mask), 1.0 - mask)
    out_fg = rn_x * mask * (1.0 + fg_gamma[None, :, None, None]) + fg_beta[None, :, None, None]
    out_bg = rn_x * (1.0 - mask) * (1.0 + bg_gamma[None, :, None, None]) + bg_beta[None, :, None, None]
    return out_fg + out_bg


if __name__ == "__main__":
    B, C, M, N = 2, 4, 16, 16
    H, W = 8, 8  # mask at half resolution; nearest-interp brings it to (M, N)

    key = jax.random.PRNGKey(0)
    kx, km, k1, k2, k3, k4 = jax.random.split(key, 6)

    x = jax.random.normal(kx, (B, C, M, N), dtype=jnp.float32)
    mask = (jax.random.uniform(km, (B, 1, H, W)) > 0.5).astype(jnp.float32)

    # Module __init__ uses zeros; use small deterministic values so the affine
    # path is actually exercised.
    fg_gamma = 0.1 * jax.random.normal(k1, (C,), dtype=jnp.float32)
    fg_beta = 0.1 * jax.random.normal(k2, (C,), dtype=jnp.float32)
    bg_gamma = 0.1 * jax.random.normal(k3, (C,), dtype=jnp.float32)
    bg_beta = 0.1 * jax.random.normal(k4, (C,), dtype=jnp.float32)

    out = rn_b_forward(x, mask, fg_gamma, fg_beta, bg_gamma, bg_beta)
    out = jax.block_until_ready(out)

    ref = rn_b_reference(x, mask, fg_gamma, fg_beta, bg_gamma, bg_beta)
    assert out.shape == (B, C, M, N)
    assert out.dtype == x.dtype
    assert jnp.allclose(out, ref, atol=1e-4, rtol=1e-4), "mismatch vs reference"

    print("KERNEL_OK")
</pallas_src>

<mosaic_0001>
module attributes {stable_mosaic.version = 11 : i64} {
  func.func @_rn_b_kernel(%arg0: i32, %arg1: i32, %arg2: memref<1x4x256xf32, #tpu.memory_space<vmem>>, %arg3: memref<1x1x256xf32, #tpu.memory_space<vmem>>, %arg4: memref<1x1x128xf32, #tpu.memory_space<vmem>>, %arg5: memref<4x8xf32, #tpu.memory_space<vmem>>, %arg6: memref<1x4x256xf32, #tpu.memory_space<vmem>>) attributes {dimension_semantics = [#tpu.dimension_semantics<parallel>, #tpu.dimension_semantics<parallel>], iteration_bounds = array<i64: 2, 1>, scalar_prefetch = 0 : i64, scratch_operands = 0 : i64, tpu.core_type = #tpu.core_type<tc>, window_params = [{transform_indices = @transform_0, window_bounds = array<i64: 1, 4, 256>}, {transform_indices = @transform_1, window_bounds = array<i64: 1, 1, 256>}, {transform_indices = @transform_2, window_bounds = array<i64: 1, 1, 128>}, {transform_indices = @transform_3, window_bounds = array<i64: 4, 8>}, {transform_indices = @transform_4, window_bounds = array<i64: 1, 4, 256>}]} {
    %c0 = arith.constant 0 : index
    %c0_0 = arith.constant 0 : index
    %c0_1 = arith.constant 0 : index
    %0 = vector.load %arg2[%c0, %c0_0, %c0_1] : memref<1x4x256xf32, #tpu.memory_space<vmem>>, vector<1x4x256xf32>
    %1 = vector.shape_cast %0 : vector<1x4x256xf32> to vector<4x256xf32>
    %c0_2 = arith.constant 0 : index
    %c0_3 = arith.constant 0 : index
    %c0_4 = arith.constant 0 : index
    %2 = vector.load %arg3[%c0_2, %c0_3, %c0_4] : memref<1x1x256xf32, #tpu.memory_space<vmem>>, vector<1x1x256xf32>
    %3 = vector.shape_cast %2 : vector<1x1x256xf32> to vector<1x256xf32>
    %cst = arith.constant 5.000000e-01 : f32
    %4 = vector.broadcast %cst : f32 to vector<1x256xf32>
    %5 = arith.cmpf ogt, %3, %4 : vector<1x256xf32>
    %6 = arith.mulf %1, %1 : vector<4x256xf32>
    %7 = vector.broadcast %3 : vector<1x256xf32> to vector<4x256xf32>
    %8 = arith.mulf %1, %7 : vector<4x256xf32>
    %9 = vector.broadcast %3 : vector<1x256xf32> to vector<4x256xf32>
    %10 = arith.mulf %6, %9 : vector<4x256xf32>
    %cst_5 = arith.constant dense<0.000000e+00> : vector<4xf32>
    %11 = vector.multi_reduction <add>, %1, %cst_5 [1] : vector<4x256xf32> to vector<4xf32>
    %12 = vector.shape_cast %11 : vector<4xf32> to vector<4x1xf32>
    %cst_6 = arith.constant dense<0.000000e+00> : vector<4xf32>
    %13 = vector.multi_reduction <add>, %6, %cst_6 [1] : vector<4x256xf32> to vector<4xf32>
    %14 = vector.shape_cast %13 : vector<4xf32> to vector<4x1xf32>
    %cst_7 = arith.constant dense<0.000000e+00> : vector<4xf32>
    %15 = vector.multi_reduction <add>, %8, %cst_7 [1] : vector<4x256xf32> to vector<4xf32>
    %16 = vector.shape_cast %15 : vector<4xf32> to vector<4x1xf32>
    %cst_8 = arith.constant dense<0.000000e+00> : vector<4xf32>
    %17 = vector.multi_reduction <add>, %10, %cst_8 [1] : vector<4x256xf32> to vector<4xf32>
    %18 = vector.shape_cast %17 : vector<4xf32> to vector<4x1xf32>
    %c0_9 = arith.constant 0 : index
    %c0_10 = arith.constant 0 : index
    %c0_11 = arith.constant 0 : index
    %19 = vector.load %arg4[%c0_9, %c0_10, %c0_11] : memref<1x1x128xf32, #tpu.memory_space<vmem>>, vector<1x1x128xf32>
    %20 = vector.shape_cast %19 : vector<1x1x128xf32> to vector<1x128xf32>
    %21 = vector.extract_strided_slice %20 {offsets = [0, 0], sizes = [1, 1], strides = [1, 1]} : vector<1x128xf32> to vector<1x1xf32>
    %22 = vector.extract_strided_slice %20 {offsets = [0, 1], sizes = [1, 1], strides = [1, 1]} : vector<1x128xf32> to vector<1x1xf32>
    %23 = arith.subf %12, %16 : vector<4x1xf32>
    %24 = arith.subf %14, %18 : vector<4x1xf32>
    %25 = vector.broadcast %21 : vector<1x1xf32> to vector<4x1xf32>
    %26 = arith.mulf %16, %25 : vector<4x1xf32>
    %27 = vector.broadcast %22 : vector<1x1xf32> to vector<4x1xf32>
    %28 = arith.mulf %23, %27 : vector<4x1xf32>
    %cst_12 = arith.constant 2.000000e+00 : f32
    %29 = vector.broadcast %cst_12 : f32 to vector<4x1xf32>
    %30 = arith.mulf %29, %26 : vector<4x1xf32>
    %31 = arith.mulf %30, %16 : vector<4x1xf32>
    %32 = arith.subf %18, %31 : vector<4x1xf32>
    %cst_13 = arith.constant 2.560000e+02 : f32
    %33 = vector.broadcast %cst_13 : f32 to vector<4x1xf32>
    %34 = arith.mulf %33, %26 : vector<4x1xf32>
    %35 = arith.mulf %34, %26 : vector<4x1xf32>
    %36 = arith.addf %32, %35 : vector<4x1xf32>
    %37 = vector.broadcast %21 : vector<1x1xf32> to vector<4x1xf32>
    %38 = arith.mulf %36, %37 : vector<4x1xf32>
    %cst_14 = arith.constant 9.99999974E-6 : f32
    %39 = vector.broadcast %cst_14 : f32 to vector<4x1xf32>
    %40 = arith.addf %38, %39 : vector<4x1xf32>
    %cst_15 = arith.constant 2.000000e+00 : f32
    %41 = vector.broadcast %cst_15 : f32 to vector<4x1xf32>
    %42 = arith.mulf %41, %28 : vector<4x1xf32>
    %43 = arith.mulf %42, %23 : vector<4x1xf32>
    %44 = arith.subf %24, %43 : vector<4x1xf32>
    %cst_16 = arith.constant 2.560000e+02 : f32
    %45 = vector.broadcast %cst_16 : f32 to vector<4x1xf32>
    %46 = arith.mulf %45, %28 : vector<4x1xf32>
    %47 = arith.mulf %46, %28 : vector<4x1xf32>
    %48 = arith.addf %44, %47 : vector<4x1xf32>
    %49 = vector.broadcast %22 : vector<1x1xf32> to vector<4x1xf32>
    %50 = arith.mulf %48, %49 : vector<4x1xf32>
    %cst_17 = arith.constant 9.99999974E-6 : f32
    %51 = vector.broadcast %cst_17 : f32 to vector<4x1xf32>
    %52 = arith.addf %50, %51 : vector<4x1xf32>
    %53 = math.rsqrt %40 : vector<4x1xf32>
    %54 = math.rsqrt %52 : vector<4x1xf32>
    %c0_18 = arith.constant 0 : index
    %c0_19 = arith.constant 0 : index
    %55 = vector.load %arg5[%c0_18, %c0_19] : memref<4x8xf32, #tpu.memory_space<vmem>>, vector<4x8xf32>
    %56 = vector.extract_strided_slice %55 {offsets = [0, 0], sizes = [4, 1], strides = [1, 1]} : vector<4x8xf32> to vector<4x1xf32>
    %57 = vector.extract_strided_slice %55 {offsets = [0, 1], sizes = [4, 1], strides = [1, 1]} : vector<4x8xf32> to vector<4x1xf32>
    %58 = vector.extract_strided_slice %55 {offsets = [0, 2], sizes = [4, 1], strides = [1, 1]} : vector<4x8xf32> to vector<4x1xf32>
    %59 = arith.mulf %53, %56 : vector<4x1xf32>
    %60 = arith.mulf %54, %57 : vector<4x1xf32>
    %61 = arith.mulf %26, %59 : vector<4x1xf32>
    %62 = arith.subf %58, %61 : vector<4x1xf32>
    %63 = arith.mulf %28, %60 : vector<4x1xf32>
    %64 = arith.subf %58, %63 : vector<4x1xf32>
    %65 = vector.shape_cast %5 : vector<1x256xi1> to vector<1x256xi1>
    %66 = vector.broadcast %65 : vector<1x256xi1> to vector<4x256xi1>
    %67 = vector.shape_cast %59 : vector<4x1xf32> to vector<4x1xf32>
    %68 = vector.broadcast %67 : vector<4x1xf32> to vector<4x256xf32>
    %69 = vector.shape_cast %60 : vector<4x1xf32> to vector<4x1xf32>
    %70 = vector.broadcast %69 : vector<4x1xf32> to vector<4x256xf32>
    %71 = arith.select %66, %68, %70 : vector<4x256xi1>, vector<4x256xf32>
    %72 = vector.shape_cast %5 : vector<1x256xi1> to vector<1x256xi1>
    %73 = vector.broadcast %72 : vector<1x256xi1> to vector<4x256xi1>
    %74 = vector.shape_cast %62 : vector<4x1xf32> to vector<4x1xf32>
    %75 = vector.broadcast %74 : vector<4x1xf32> to vector<4x256xf32>
    %76 = vector.shape_cast %64 : vector<4x1xf32> to vector<4x1xf32>
    %77 = vector.broadcast %76 : vector<4x1xf32> to vector<4x256xf32>
    %78 = arith.select %73, %75, %77 : vector<4x256xi1>, vector<4x256xf32>
    %79 = arith.mulf %1, %71 : vector<4x256xf32>
    %80 = arith.addf %79, %78 : vector<4x256xf32>
    %c0_20 = arith.constant 0 : index
    %c0_21 = arith.constant 0 : index
    %c0_22 = arith.constant 0 : index
    %81 = vector.load %arg6[%c0_20, %c0_21, %c0_22] : memref<1x4x256xf32, #tpu.memory_space<vmem>>, vector<1x4x256xf32>
    %82 = vector.shape_cast %81 : vector<1x4x256xf32> to vector<4x256xf32>
    %83 = vector.shape_cast %80 : vector<4x256xf32> to vector<1x4x256xf32>
    tpu.vector_store %arg6[%c0_20, %c0_21, %c0_22], %83 {strides = array<i32>} : memref<1x4x256xf32, #tpu.memory_space<vmem>>, vector<1x4x256xf32>,
    return
  }
  func.func @transform_0(%arg0: i32, %arg1: i32) -> (i32, i32, i32) {
    %c0_i32 = arith.constant 0 : i32
    %c0_i32_0 = arith.constant 0 : i32
    return %arg0, %arg1, %c0_i32 : i32, i32, i32
  }
  func.func @transform_1(%arg0: i32, %arg1: i32) -> (i32, i32, i32) {
    %c0_i32 = arith.constant 0 : i32
    %c0_i32_0 = arith.constant 0 : i32
    %c0_i32_1 = arith.constant 0 : i32
    return %arg0, %c0_i32, %c0_i32_0 : i32, i32, i32
  }
  func.func @transform_2(%arg0: i32, %arg1: i32) -> (i32, i32, i32) {
    %c0_i32 = arith.constant 0 : i32
    %c0_i32_0 = arith.constant 0 : i32
    %c0_i32_1 = arith.constant 0 : i32
    return %arg0, %c0_i32, %c0_i32_0 : i32, i32, i32
  }
  func.func @transform_3(%arg0: i32, %arg1: i32) -> (i32, i32) {
    %c0_i32 = arith.constant 0 : i32
    %c0_i32_0 = arith.constant 0 : i32
    return %arg1, %c0_i32 : i32, i32
  }
  func.func @transform_4(%arg0: i32, %arg1: i32) -> (i32, i32, i32) {
    %c0_i32 = arith.constant 0 : i32
    %c0_i32_0 = arith.constant 0 : i32
    return %arg0, %arg1, %c0_i32 : i32, i32, i32
  }
}

</mosaic_0001>

<llo_original>
// kernel: tpu_custom_call.1
$region0: #{tpu_custom_call.1}
  #allocation0 [shape = 'u32[]', space=smem, size = 0x4, offset = 0x4, fixed_abs, tag = 'smem constant byte address 0x4 - core index']
  #allocation1 [shape = 'u32[144,128]{1,0:T(1,128)}', space=vmem, size = 0x12000, scoped, tag = 'internal scratch']
  %s0 = inlined_call_operand.hbm [shape: f32[2,4,256], index: 0, kind: input, shape index: {}]
  %s1 = inlined_call_operand.hbm [shape: f32[2,1,256], index: 1, kind: input, shape index: {}]
  %s2 = inlined_call_operand.vmem [shape: f32[2,1,128], index: 2, kind: input, shape index: {}]
  %s3 = inlined_call_operand.vmem [shape: f32[4,8], index: 3, kind: input, shape index: {}]
  %s4 = inlined_call_operand.hbm [shape: f32[2,4,256], index: 4, kind: output, shape index: {}]
  %s5 = sld [smem:[#allocation0]]
  $region57: #{tpu_custom_call.1} parent=0
    _
  %s7 = ssub.s32 1, %s5
  %s8 = scalar_select 0, %s7, %s5
  $region1: #{tpu_custom_call.1} parent=0
    #allocation2 [shape = 'u8[8192]{0}', space=vmem, size = 0x2000, scoped, tag = 'input window, operand 0']
    #allocation3 [shape = 's32[2]{0}', space=sflag, size = 0x8, scoped, tag = 'scoped memory for tpu_custom_call.1']
    #allocation4 [shape = 's32[2]{0}', space=sflag, size = 0x8, scoped, tag = 'scoped memory for tpu_custom_call.1']
    #allocation5 [shape = 'u8[2048]{0}', space=vmem, size = 0x800, scoped, tag = 'input window, operand 1']
    #allocation6 [shape = 's32[2]{0}', space=sflag, size = 0x8, scoped, tag = 'scoped memory for tpu_custom_call.1']
    #allocation7 [shape = 'u8[8192]{0}', space=vmem, size = 0x2000, scoped, tag = 'output window, operand 0']
    %9 = vsyncpa [#allocation3], 0
    %s10 = scalar_lea.sflag [#allocation3], 1
    %11 = vsyncpa %s10, 0
    %12 = vsyncpa [#allocation6], 0
    %s13 = scalar_lea.sflag [#allocation6], 1
    %14 = vsyncpa %s13, 0
    %15 = vsyncpa [#allocation4], 0
    %s16 = scalar_lea.sflag [#allocation4], 1
    %17 = vsyncpa %s16, 0
    loop: start=0, step=1, limit=4
    $region2: #{tpu_custom_call.1} parent=1 // loop_pre_header
      _
    $region3: #{tpu_custom_call.1} parent=1 // loop_header
      %s19 = sphi 0, %s23
      %p20 = scmp.ge.s32.totalorder %s19, 4
      %s26 = sphi 0, %s38
      %s27 = sphi 0, %s34
      %s28 = sphi 0, %s26
      %s29 = sphi 0, %s27
      %s30 = sphi 0, %s28
      %s31 = sphi 0, %s29
      %s43 = sphi 0, %s45
      %s46 = sphi 0, %s43
      %s47 = sphi 0, %s46
      %s63 = sphi 0, %s47
      %s69 = sphi 0, %s71
      %s72 = sphi 0, %s69
      %s73 = sphi 0, %s72
      %s89 = sphi 0, %s73
      %s95 = sphi 0, %s97
      %s98 = sphi 0, %s95
      %s99 = sphi 0, %s98
      %s115 = sphi 0, %s99
      %s121 = sphi 0, %s123
      %s124 = sphi 0, %s121
      %s125 = sphi 0, %s124
      %s141 = sphi 0, %s125
      %s149 = sphi 0, %s151
      %s152 = sphi 0, %s149
      %s153 = sphi 0, %s152
      %s169 = sphi 0, %s153
    $region4: #{tpu_custom_call.1} parent=1 // loop_header_branch
      %22 = sbr.rel (%p20) target = $region8
    $region5: #{tpu_custom_call.1} parent=1 // loop_body
      %s24 = ssub.s32 %s19, 1
      %s25 = ssub.s32 %s19, 2
      %s32 = sadd.s32 1, %s27
      %p33 = scmp.ge.s32.totalorder %s32, 1
      %s34 = scalar_select %p33, 0, %s32
      %s35 = sadd.s32 1, %s26
      %s36 = scalar_select %p33, %s35, %s26
      %p37 = scmp.ge.s32.totalorder %s36, 2
      %s38 = scalar_select %p37, 0, %s36
      %s39 = ssub.s32 %s26, %s38
      %s40 = ssub.s32 %s27, %s34
      %s41 = sor.u32 %s39, %s40
      %p42 = scmp.eq.s32.totalorder %s41, 0
      %s44 = sadd.s32 %s43, 1
      %s45 = scalar_select %p42, %s43, %s44
      %p48 = pneg %p42
      %p49 = scmp.eq.s32.totalorder %s19, 1
      %p50 = por %p48, %p49
      %p51 = scmp.ne.s32.totalorder %s43, %s46
      %p52 = scmp.eq.s32.totalorder %s19, 0
      %p53 = por %p51, %p52
      %p54 = scmp.ne.s32.totalorder %s43, %s46
      %p55 = scmp.eq.s32.totalorder %s24, 1
      %p56 = por %p54, %p55
      %p57 = scmp.ne.s32.totalorder %s46, %s47
      %p58 = scmp.eq.s32.totalorder %s24, 0
      %p59 = por %p57, %p58
      %p60 = scmp.ne.s32.totalorder %s46, %s47
      %p61 = scmp.eq.s32.totalorder %s25, 1
      %p62 = por %p60, %p61
      %p64 = scmp.ne.s32.totalorder %s47, %s63
      %p65 = scmp.eq.s32.totalorder %s25, 0
      %p66 = por %p64, %p65
      %s67 = ssub.s32 %s26, %s38
      %p68 = scmp.eq.s32.totalorder %s67, 0
      %s70 = sadd.s32 %s69, 1
      %s71 = scalar_select %p68, %s69, %s70
      %p74 = pneg %p68
      %p75 = scmp.eq.s32.totalorder %s19, 1
      %p76 = por %p74, %p75
      %p77 = scmp.ne.s32.totalorder %s69, %s72
      %p78 = scmp.eq.s32.totalorder %s19, 0
      %p79 = por %p77, %p78
      %p80 = scmp.ne.s32.totalorder %s69, %s72
      %p81 = scmp.eq.s32.totalorder %s24, 1
      %p82 = por %p80, %p81
      %p83 = scmp.ne.s32.totalorder %s72, %s73
      %p84 = scmp.eq.s32.totalorder %s24, 0
      %p85 = por %p83, %p84
      %p86 = scmp.ne.s32.totalorder %s72, %s73
      %p87 = scmp.eq.s32.totalorder %s25, 1
      %p88 = por %p86, %p87
      %p90 = scmp.ne.s32.totalorder %s73, %s89
      %p91 = scmp.eq.s32.totalorder %s25, 0
      %p92 = por %p90, %p91
      %s93 = ssub.s32 %s26, %s38
      %p94 = scmp.eq.s32.totalorder %s93, 0
      %s96 = sadd.s32 %s95, 1
      %s97 = scalar_select %p94, %s95, %s96
      %p100 = pneg %p94
      %p101 = scmp.eq.s32.totalorder %s19, 1
      %p102 = por %p100, %p101
      %p103 = scmp.ne.s32.totalorder %s95, %s98
      %p104 = scmp.eq.s32.totalorder %s19, 0
      %p105 = por %p103, %p104
      %p106 = scmp.ne.s32.totalorder %s95, %s98
      %p107 = scmp.eq.s32.totalorder %s24, 1
      %p108 = por %p106, %p107
      %p109 = scmp.ne.s32.totalorder %s98, %s99
      %p110 = scmp.eq.s32.totalorder %s24, 0
      %p111 = por %p109, %p110
      %p112 = scmp.ne.s32.totalorder %s98, %s99
      %p113 = scmp.eq.s32.totalorder %s25, 1
      %p114 = por %p112, %p113
      %p116 = scmp.ne.s32.totalorder %s99, %s115
      %p117 = scmp.eq.s32.totalorder %s25, 0
      %p118 = por %p116, %p117
      %s119 = ssub.s32 %s27, %s34
      %p120 = scmp.eq.s32.totalorder %s119, 0
      %s122 = sadd.s32 %s121, 1
      %s123 = scalar_select %p120, %s121, %s122
      %p126 = pneg %p120
      %p127 = scmp.eq.s32.totalorder %s19, 1
      %p128 = por %p126, %p127
      %p129 = scmp.ne.s32.totalorder %s121, %s124
      %p130 = scmp.eq.s32.totalorder %s19, 0
      %p131 = por %p129, %p130
      %p132 = scmp.ne.s32.totalorder %s121, %s124
      %p133 = scmp.eq.s32.totalorder %s24, 1
      %p134 = por %p132, %p133
      %p135 = scmp.ne.s32.totalorder %s124, %s125
      %p136 = scmp.eq.s32.totalorder %s24, 0
      %p137 = por %p135, %p136
      %p138 = scmp.ne.s32.totalorder %s124, %s125
      %p139 = scmp.eq.s32.totalorder %s25, 1
      %p140 = por %p138, %p139
      %p142 = scmp.ne.s32.totalorder %s125, %s141
      %p143 = scmp.eq.s32.totalorder %s25, 0
      %p144 = por %p142, %p143
      %s145 = ssub.s32 %s26, %s38
      %s146 = ssub.s32 %s27, %s34
      %s147 = sor.u32 %s145, %s146
      %p148 = scmp.eq.s32.totalorder %s147, 0
      %s150 = sadd.s32 %s149, 1
      %s151 = scalar_select %p148, %s149, %s150
      %p154 = pneg %p148
      %p155 = scmp.eq.s32.totalorder %s19, 1
      %p156 = por %p154, %p155
      %p157 = scmp.ne.s32.totalorder %s149, %s152
      %p158 = scmp.eq.s32.totalorder %s19, 0
      %p159 = por %p157, %p158
      %p160 = scmp.ne.s32.totalorder %s149, %s152
      %p161 = scmp.eq.s32.totalorder %s24, 1
      %p162 = por %p160, %p161
      %p163 = scmp.ne.s32.totalorder %s152, %s153
      %p164 = scmp.eq.s32.totalorder %s24, 0
      %p165 = por %p163, %p164
      %p166 = scmp.ne.s32.totalorder %s152, %s153
      %p167 = scmp.eq.s32.totalorder %s25, 1
      %p168 = por %p166, %p167
      %p170 = scmp.ne.s32.totalorder %s153, %s169
      %p171 = scmp.eq.s32.totalorder %s25, 0
      %p172 = por %p170, %p171
      %p173 = scmp.le.s32.totalorder 1, %s19
      %p174 = scmp.lt.s32.totalorder %s19, 3
      %p175 = pnand %p173, %p174
      %p176 = pneg %p175
      // Predicated region
      $region9: #{tpu_custom_call.1} parent=5 // pred_check
        _
      $region10: #{tpu_custom_call.1} parent=5 // pred_check_branch
        %178 = sbr.rel (%p175) target = $region12
      $region11: #{tpu_custom_call.1} parent=5 // pred_region
        %s179 = ssub.s32 %s19, 1
        // Predicated region
        $region13: #{tpu_custom_call.1} parent=11 // pred_check
          %p180 = pneg %p137
        $region14: #{tpu_custom_call.1} parent=11 // pred_check_branch
          %182 = sbr.rel (%p180) target = $region16
        $region15: #{tpu_custom_call.1} parent=11 // pred_region
          %p183 = scmp.lt.s32.totalorder %s29, 0
          %s184 = scalar_select %p183, %s29, 0
          %s185 = smul.addr %s184, 4
          %s186 = scalar_lea.vmem %s3, %s185
        $region16: #{tpu_custom_call.1} parent=11 // pred_fallthru
          _
      $region12: #{tpu_custom_call.1} parent=5 // pred_fallthru
        _
      %p187 = scmp.lt.s32.totalorder %s19, 2
      // Predicated region
      $region17: #{tpu_custom_call.1} parent=5 // pred_check
        %p188 = pneg %p187
      $region18: #{tpu_custom_call.1} parent=5 // pred_check_branch
        %190 = sbr.rel (%p188) target = $region20
      $region19: #{tpu_custom_call.1} parent=5 // pred_region
        // Predicated region
        $region21: #{tpu_custom_call.1} parent=19 // pred_check
          %p191 = pneg %p53
        $region22: #{tpu_custom_call.1} parent=19 // pred_check_branch
          %193 = sbr.rel (%p191) target = $region24
        $region23: #{tpu_custom_call.1} parent=19 // pred_region
          %s194 = sand.u32 %s43, 1
          %s195 = scalar_lea.sflag [#allocation3], %s194
          %s196 = sand.u32 %s43, 1
          %s197 = smul.addr %s196, 8
          %s198 = scalar_lea.vmem [#allocation2], %s197
          %s200 = ssub.s32 128, 128
          %201 = vsyncadd %s195, %s200
          %s202 = smul.addr %s27, 2
          %s203 = smul.addr %s26, 2
          %s204 = sadd.s32 %s202, %s203
          %s205 = smul.addr %s204, 64
          %s206 = scalar_lea.hbm %s0, %s205
          %s208 = sshll.u32 %s198, 4
          %s209 = int_to_ptr.vmem [resolvable:$true] %s208
          %211 = dma.hbm_to_vmem [thread:$0]  %s206, 128, %s209, %s195
        $region24: #{tpu_custom_call.1} parent=19 // pred_fallthru
          _
        // Predicated region
        $region25: #{tpu_custom_call.1} parent=19 // pred_check
          %p212 = pneg %p79
        $region26: #{tpu_custom_call.1} parent=19 // pred_check_branch
          %214 = sbr.rel (%p212) target = $region28
        $region27: #{tpu_custom_call.1} parent=19 // pred_region
          %s215 = sand.u32 %s69, 1
          %s216 = scalar_lea.sflag [#allocation6], %s215
          %s217 = sand.u32 %s69, 1
          %s218 = smul.addr %s217, 2
          %s219 = scalar_lea.vmem [#allocation5], %s218
          %s221 = ssub.s32 32, 32
          %222 = vsyncadd %s216, %s221
          %s223 = smul.addr %s26, 2
          %s224 = smul.addr %s223, 16
          %s225 = scalar_lea.hbm %s1, %s224
          %s227 = sshll.u32 %s219, 4
          %s228 = int_to_ptr.vmem [resolvable:$true] %s227
          %230 = dma.hbm_to_vmem [thread:$0]  %s225, 32, %s228, %s216
        $region28: #{tpu_custom_call.1} parent=19 // pred_fallthru
          _
        // Predicated region
        $region29: #{tpu_custom_call.1} parent=19 // pred_check
          %p231 = pneg %p105
        $region30: #{tpu_custom_call.1} parent=19 // pred_check_branch
          %233 = sbr.rel (%p231) target = $region32
        $region31: #{tpu_custom_call.1} parent=19 // pred_region
          %p234 = scmp.lt.s32.totalorder %s26, 1
          %s235 = scalar_select %p234, %s26, 1
          %s236 = scalar_lea.vmem %s2, %s235
        $region32: #{tpu_custom_call.1} parent=19 // pred_fallthru
          _
      $region20: #{tpu_custom_call.1} parent=5 // pred_fallthru
        _
      %p237 = scmp.le.s32.totalorder 1, %s19
      %p238 = scmp.lt.s32.totalorder %s19, 3
      %p239 = pnand %p237, %p238
      %p240 = pneg %p239
      // Predicated region
      $region33: #{tpu_custom_call.1} parent=5 // pred_check
        _
      $region34: #{tpu_custom_call.1} parent=5 // pred_check_branch
        %242 = sbr.rel (%p239) target = $region36
      $region35: #{tpu_custom_call.1} parent=5 // pred_region
        %s243 = ssub.s32 %s19, 1
        %s244 = sand.u32 %s46, 1
        %s245 = scalar_lea.sflag [#allocation3], %s244
        %s246 = sand.u32 %s46, 1
        %s247 = smul.addr %s246, 8
        %s248 = scalar_lea.vmem [#allocation2], %s247
        // Predicated region
        $region37: #{tpu_custom_call.1} parent=35 // pred_check
          %p249 = pneg %p59
        $region38: #{tpu_custom_call.1} parent=35 // pred_check_branch
          %251 = sbr.rel (%p249) target = $region40
        $region39: #{tpu_custom_call.1} parent=35 // pred_region
          %252 = dma.done %s245, 128
        $region40: #{tpu_custom_call.1} parent=35 // pred_fallthru
          _
        %s253 = sand.u32 %s72, 1
        %s254 = scalar_lea.sflag [#allocation6], %s253
        %s255 = sand.u32 %s72, 1
        %s256 = smul.addr %s255, 2
        %s257 = scalar_lea.vmem [#allocation5], %s256
        // Predicated region
        $region41: #{tpu_custom_call.1} parent=35 // pred_check
          %p258 = pneg %p85
        $region42: #{tpu_custom_call.1} parent=35 // pred_check_branch
          %260 = sbr.rel (%p258) target = $region44
        $region43: #{tpu_custom_call.1} parent=35 // pred_region
          %261 = dma.done %s254, 32
        $region44: #{tpu_custom_call.1} parent=35 // pred_fallthru
          _
        %s262 = sand.u32 %s46, 1
        %s263 = scalar_lea.sflag [#allocation3], %s262
        %s264 = sand.u32 %s46, 1
        %s265 = smul.addr %s264, 8
        %s266 = scalar_lea.vmem [#allocation2], %s265
        %p267 = pneg %p59
        %p268 = pneg %p56
        %s269 = sand.u32 %s72, 1
        %s270 = scalar_lea.sflag [#allocation6], %s269
        %s271 = sand.u32 %s72, 1
        %s272 = smul.addr %s271, 2
        %s273 = scalar_lea.vmem [#allocation5], %s272
        %p274 = pneg %p85
        %p275 = pneg %p82
        %p276 = scmp.lt.s32.totalorder %s28, 1
        %s277 = scalar_select %p276, %s28, 1
        %s278 = scalar_lea.vmem %s2, %s277
        %p279 = pneg %p111
        %p280 = pneg %p108
        %p281 = scmp.lt.s32.totalorder %s29, 0
        %s282 = scalar_select %p281, %s29, 0
        %s283 = smul.addr %s282, 4
        %s284 = scalar_lea.vmem %s3, %s283
        %p285 = pneg %p137
        %p286 = pneg %p134
        %p287 = pneg %p165
        %p288 = pneg %p162
        %s289 = sand.u32 %s152, 1
        %s290 = scalar_lea.sflag [#allocation4], %s289
        %s291 = sand.u32 %s152, 1
        %s292 = smul.addr %s291, 8
        %s293 = scalar_lea.vmem [#allocation7], %s292
        %p294 = scmp.lt.s32.totalorder %s28, 1
        %s295 = scalar_select %p294, %s28, 1
        %s296 = scalar_lea.vmem %s2, %s295
        %p297 = scmp.lt.s32.totalorder %s29, 0
        %s298 = scalar_select %p297, %s29, 0
        %s299 = smul.addr %s298, 4
        %s300 = scalar_lea.vmem %s3, %s299
        %v301 = vld [vmem:[%s248] sm:$0xff]
        %v302 = vld [vmem:[%s257] sm:$0x3]
        %vm303 = vcmp.gt.f32.partialorder %v302, 0.5
        %v304 = vmul.f32 %v301, %v301
        %v306 = vlaneseq
        %v307 = vshrl.u32 %v306, 7
        %v308 = vsub.s32 0, %v307
        %v309 = vrot.slane %v302, %v308
        %v310 = vlaneseq
        %v311 = vshrl.u32 %v310, 7
        %v312 = vsub.s32 1, %v311
        %v313 = vrot.slane %v302, %v312
        %v314 = vcombine.low %v309, %v313
        %v316 = vmul.f32 %v301, %v314
        %v317 = vmul.f32 %v304, %v314
        %v319 = vcombine.high %v301, %v301
        %vm321 = vcmask 1043456
        %v322 = vsel %vm321, %v301, 0.0
        %v323 = vsel %vm321, %v319, 0.0
        %v324 = vadd.f32 %v322, %v323
        %325 = vadd.xlane.f32.xlu0 %v324
        %v326 = vpop.xlane.xlu0 %325
        %v328 = vcombine.high %v304, %v304
        %v330 = vsel %vm321, %v304, 0.0
        %v331 = vsel %vm321, %v328, 0.0
        %v332 = vadd.f32 %v330, %v331
        %333 = vadd.xlane.f32.xlu0 %v332
        %v334 = vpop.xlane.xlu0 %333
        %v336 = vcombine.high %v316, %v316
        %v338 = vsel %vm321, %v316, 0.0
        %v339 = vsel %vm321, %v336, 0.0
        %v340 = vadd.f32 %v338, %v339
        %341 = vadd.xlane.f32.xlu0 %v340
        %v342 = vpop.xlane.xlu0 %341
        %v344 = vcombine.high %v317, %v317
        %v346 = vsel %vm321, %v317, 0.0
        %v347 = vsel %vm321, %v344, 0.0
        %v348 = vadd.f32 %v346, %v347
        %349 = vadd.xlane.f32.xlu0 %v348
        %v350 = vpop.xlane.xlu0 %349
        %v351 = vld [vmem:[%s296] sm:$0x1]
        %v352 = vsub.f32 %v326, %v342
        %v353 = vsub.f32 %v334, %v350
        %v355 = vlaneseq
        %v356 = vshrl.u32 %v355, 7
        %v357 = vsub.s32 0, %v356
        %v358 = vrot.slane %v351, %v357
        %v360 = vmul.f32 %v342, %v358
        %v361 = vmul.f32 %v352, %v358
        %v362 = vmul.f32 %v360, 2.0
        %v363 = vmul.f32 %v362, %v342
        %v364 = vsub.f32 %v350, %v363
        %v365 = vmul.f32 %v360, 256.0
        %v366 = vmul.f32 %v365, %v360
        %v367 = vadd.f32 %v364, %v366
        %v368 = vmul.f32 %v367, %v358
        %v369 = vadd.f32 %v368, 1e-05
        %v370 = vmul.f32 %v361, 2.0
        %v371 = vmul.f32 %v370, %v352
        %v372 = vsub.f32 %v353, %v371
        %v373 = vmul.f32 %v361, 256.0
        %v374 = vmul.f32 %v373, %v361
        %v375 = vadd.f32 %v372, %v374
        %v376 = vmul.f32 %v375, %v358
        %v377 = vadd.f32 %v376, 1e-05
        %v378 = vrsqrt.pop %v369
        %v379 = vrsqrt.pop %v377
        %v380 = vld [vmem:[%s300] sm:$0xf]
        %v381 = vmul.f32 %v378, %v380
        %v382 = vmul.f32 %v379, %v380
        %v383 = vmul.f32 %v360, %v381
        %385 = vrot.lane.b32.xlu0 %v383, 2
        %v386 = vpop.permute.xlu0 %385
        %v388 = vsub.f32 %v380, %v386
        %v389 = vmul.f32 %v361, %v382
        %391 = vrot.lane.b32.xlu0 %v389, 1
        %v392 = vpop.permute.xlu0 %391
        %v394 = vsub.f32 %v380, %v392
        %v395 = vsel %vm303, 1, 0
        %v396 = vlaneseq
        %v397 = vshrl.u32 %v396, 7
        %v398 = vsub.s32 0, %v397
        %v399 = vrot.slane %v395, %v398
        %v400 = vlaneseq
        %v401 = vshrl.u32 %v400, 7
        %v402 = vsub.s32 1, %v401
        %v403 = vrot.slane %v395, %v402
        %vm404 = vcmp.eq.s32.totalorder %v399, 1
        %vm405 = vcmp.eq.s32.totalorder %v403, 1
        %407 = vset.pattern.permute.xlu0 0
        %408 = vperm.xlu0 %407, %v381
        %v409 = vpop.permute.xlu0 %408
        %412 = vset.pattern.permute.xlu0 1
        %413 = vperm.xlu0 %412, %v382
        %v414 = vpop.permute.xlu0 %413
        %v416 = vsel %vm404, %v409, %v414
        %v417 = vsel %vm405, %v409, %v414
        %419 = vset.pattern.permute.xlu0 2
        %420 = vperm.xlu0 %419, %v388
        %v421 = vpop.permute.xlu0 %420
        %424 = vset.pattern.permute.xlu0 2
        %425 = vperm.xlu0 %424, %v394
        %v426 = vpop.permute.xlu0 %425
        %v428 = vsel %vm404, %v421, %v426
        %v429 = vsel %vm405, %v421, %v426
        %v432 = vcombine.low %v416, %v417
        %v434 = vmul.f32 %v301, %v432
        %v437 = vcombine.low %v428, %v429
        %v439 = vadd.f32 %v434, %v437
        %440 = vst [vmem:[%s293] sm:$0xff] %v439
        %s441 = sand.u32 %s152, 1
        %s442 = scalar_lea.sflag [#allocation4], %s441
        %s443 = sand.u32 %s152, 1
        %s444 = smul.addr %s443, 8
        %s445 = scalar_lea.vmem [#allocation7], %s444
        // Predicated region
        $region45: #{tpu_custom_call.1} parent=35 // pred_check
          %p446 = pneg %p162
        $region46: #{tpu_custom_call.1} parent=35 // pred_check_branch
          %448 = sbr.rel (%p446) target = $region48
        $region47: #{tpu_custom_call.1} parent=35 // pred_region
          %s450 = ssub.s32 128, 128
          %451 = vsyncadd %s442, %s450
          %s452 = smul.addr %s29, 2
          %s453 = smul.addr %s28, 2
          %s454 = sadd.s32 %s452, %s453
          %s455 = smul.addr %s454, 64
          %s456 = scalar_lea.hbm %s4, %s455
          %s458 = sshll.u32 %s445, 4
          %s459 = int_to_ptr.vmem [resolvable:$true] %s458
          %461 = dma.vmem_to_hbm [thread:$0]  %s459, 128, %s456, %s442
        $region48: #{tpu_custom_call.1} parent=35 // pred_fallthru
          _
      $region36: #{tpu_custom_call.1} parent=5 // pred_fallthru
        _
      %p462 = scmp.le.s32.totalorder 2, %s19
      // Predicated region
      $region49: #{tpu_custom_call.1} parent=5 // pred_check
        %p463 = pneg %p462
      $region50: #{tpu_custom_call.1} parent=5 // pred_check_branch
        %465 = sbr.rel (%p463) target = $region52
      $region51: #{tpu_custom_call.1} parent=5 // pred_region
        %s466 = ssub.s32 %s19, 2
        // Predicated region
        $region53: #{tpu_custom_call.1} parent=51 // pred_check
          %p467 = pneg %p168
        $region54: #{tpu_custom_call.1} parent=51 // pred_check_branch
          %469 = sbr.rel (%p467) target = $region56
        $region55: #{tpu_custom_call.1} parent=51 // pred_region
          %s470 = sand.u32 %s153, 1
          %s471 = scalar_lea.sflag [#allocation4], %s470
          %s472 = sand.u32 %s153, 1
          %s473 = smul.addr %s472, 8
          %s474 = scalar_lea.vmem [#allocation7], %s473
          %475 = dma.done %s471, 128
        $region56: #{tpu_custom_call.1} parent=51 // pred_fallthru
          _
      $region52: #{tpu_custom_call.1} parent=5 // pred_fallthru
        _
    $region6: #{tpu_custom_call.1} parent=1 // loop_footer
      %s23 = sadd.s32 1, %s19
    $region7: #{tpu_custom_call.1} parent=1 // loop_footer_branch
      %18 = sbr.rel target = $region3
    $region8: #{tpu_custom_call.1} parent=1 // loop_exit
      _
    %476 = vsyncpa [#allocation3], 1
    %s477 = scalar_lea.sflag [#allocation3], 1
    %478 = vsyncpa %s477, 1
    %479 = vsyncpa [#allocation6], 1
    %s480 = scalar_lea.sflag [#allocation6], 1
    %481 = vsyncpa %s480, 1
    %482 = vsyncpa [#allocation4], 1
    %s483 = scalar_lea.sflag [#allocation4], 1
    %484 = vsyncpa %s483, 1

</llo_original>
